<compile_context>
chip_gen: v5e
topology: v5e:2x2
jax: 0.10.0
libtpu: 0.0.40
codegen_flags: <defaults>
</compile_context>

<pallas_src>
import functools
import math

import jax
import jax.numpy as jnp
from jax.experimental import pallas as pl
from jax.experimental.pallas import tpu as pltpu

# Sobel weights (same as the PyTorch module) -- used only by the pure-JAX
# reference below.  The kernel uses the separable form:
#   Kx = [1,2,1]^T (x) [-1,0,1]     Ky = [-1,0,1]^T (x) [1,2,1]
_SOBEL_X = ((-1.0, 0.0, 1.0),
            (-2.0, 0.0, 2.0),
            (-1.0, 0.0, 1.0))
_SOBEL_Y = ((-1.0, -2.0, -1.0),
            ( 0.0,  0.0,  0.0),
            ( 1.0,  2.0,  1.0))


def _sobel_kernel(x_ref, o_ref, *, img_h):
    """x_ref/o_ref: (rows, W) blocks, rows = whole number of images of img_h rows."""
    x = x_ref[...].astype(jnp.float32)            # cast in-kernel (HBM stays native dtype)
    rb, w = x.shape

    # In-register alignment pads (VMEM-only; never an extra HBM pass).  They make
    # every pltpu.roll below operate on an (8k, 128k) shape, and the zero column
    # at index `w` provides the zero right-border for column w-1.
    wp = -(-w // 128) * 128
    rp = -(-rb // 8) * 8
    if wp != w:
        x = jnp.concatenate([x, jnp.zeros((rb, wp - w), jnp.float32)], axis=1)
    if rp != rb:
        x = jnp.concatenate([x, jnp.zeros((rp - rb, wp), jnp.float32)], axis=0)

    row = jax.lax.broadcasted_iota(jnp.int32, (rp, wp), 0) % img_h
    col = jax.lax.broadcasted_iota(jnp.int32, (rp, wp), 1)
    first_col = col == 0
    last_col = col == wp - 1
    first_row = row == 0              # also kills wrap-around across image boundaries
    last_row = row == img_h - 1       # inside a multi-image block

    # ---- horizontal (lane) pass: neighbours via lane rotate + zero border ----
    # roll(x, shift=k)[j] = x[j-k]; shift = wp-1 is the non-negative form of -1.
    left = jnp.where(first_col, 0.0, pltpu.roll(x, shift=1, axis=1))       # x[:, j-1]
    right = jnp.where(last_col, 0.0, pltpu.roll(x, shift=wp - 1, axis=1))  # x[:, j+1]
    dh = right - left                 # [-1, 0, 1] horizontally
    sh = left + 2.0 * x + right       # [ 1, 2, 1] horizontally

    # ---- vertical (sublane) pass: row neighbours via sublane rotate ----
    dh_up = jnp.where(first_row, 0.0, pltpu.roll(dh, shift=1, axis=0))       # dh[i-1]
    dh_dn = jnp.where(last_row, 0.0, pltpu.roll(dh, shift=rp - 1, axis=0))   # dh[i+1]
    sh_up = jnp.where(first_row, 0.0, pltpu.roll(sh, shift=1, axis=0))       # sh[i-1]
    sh_dn = jnp.where(last_row, 0.0, pltpu.roll(sh, shift=rp - 1, axis=0))   # sh[i+1]

    gx = dh_up + 2.0 * dh + dh_dn     # [ 1, 2, 1]^T vertically
    gy = sh_dn - sh_up                # [-1, 0, 1]^T vertically

    mag = jnp.sqrt(gx * gx + gy * gy)
    if (rp, wp) != (rb, w):
        mag = mag[:rb, :w]
    o_ref[...] = mag


def _images_per_block(m, img_h, padded_w, itemsize, requested=None,
                      target_bytes=2 << 20, min_block_bytes=1 << 20, min_steps=8):
    """Whole images per grid step.

    Targets ~target_bytes of in+out traffic per block, then shrinks B so the grid
    has >= min_steps steps (>= 4 per TensorCore on v7x) as long as blocks stay
    >= min_block_bytes.  Block rows (B * img_h) are kept a multiple of the input
    dtype's sublane tiling unless the block spans every row.
    """
    bytes_per_image = img_h * padded_w * (itemsize + 4)   # input + f32 output
    if requested is None:
        b = max(1, min(m, target_bytes // max(bytes_per_image, 1)))
        if pl.cdiv(m, b) < min_steps:
            b_deep = max(1, m // min_steps)
            if b_deep * bytes_per_image >= min_block_bytes:
                b = min(b, b_deep)
    else:
        b = max(1, min(m, int(requested)))
    if b < m:
        sublane = max(8, 32 // max(itemsize, 1))           # f32: 8, bf16: 16, int8: 32
        k = sublane // math.gcd(img_h, sublane)
        b = max(k, (b // k) * k)
        b = min(b, m)
    return b


def _vmem_limit_bytes(block_rows, padded_w, itemsize):
    """Double-buffered I/O blocks + f32 intermediates, capped at ~75% of VMEM."""
    cap = 128 * 1024 * 1024
    try:
        cap = int(pltpu.get_tpu_info().vmem_capacity_bytes)   # 64 MiB/TC on v7x
    except Exception:
        pass
    need = block_rows * padded_w * (2 * (itemsize + 4) + 10 * 4)
    return int(min(cap * 3 // 4, max(32 * 1024 * 1024, need)))


def sobel_filter(x, *, block_images=None):
    """x: (N, 1, H, W) -> (N, 1, H, W) float32 Sobel edge magnitude."""
    if x.ndim != 4:
        raise ValueError("expected NCHW input")
    N, C, H, W = x.shape
    assert C == 1, "SobelFilter is defined for single-channel input"
    M = N * C
    rows = M * H
    x2 = x.reshape(rows, W)                              # free (metadata-only) reshape

    itemsize = jnp.dtype(x.dtype).itemsize
    wp = -(-W // 128) * 128                              # width the f32 intermediates use
    B = _images_per_block(M, H, wp, itemsize, requested=block_images)
    Rb = B * H
    grid = (pl.cdiv(M, B),)                              # ragged last block is fine: each
                                                         # image is independent and OOB
                                                         # writes are masked by Pallas.

    out = pl.pallas_call(
        functools.partial(_sobel_kernel, img_h=H),
        out_shape=jax.ShapeDtypeStruct((rows, W), jnp.float32),
        grid_spec=pltpu.PrefetchScalarGridSpec(
            num_scalar_prefetch=0,
            grid=grid,
            in_specs=[pl.BlockSpec((Rb, W), lambda i: (i, 0))],
            out_specs=pl.BlockSpec((Rb, W), lambda i: (i, 0)),
        ),
        compiler_params=pltpu.CompilerParams(
            dimension_semantics=("parallel",),
            vmem_limit_bytes=_vmem_limit_bytes(-(-Rb // 8) * 8, wp, itemsize),
        ),
    )(x2)
    return out.reshape(N, C, H, W)


def _sobel_reference(x):
    """Pure-JAX reference matching PyTorch Conv2d(padding=1) semantics."""
    x = x.astype(jnp.float32)
    N, C, H, W = x.shape
    xp = jnp.pad(x, ((0, 0), (0, 0), (1, 1), (1, 1)))
    gx = jnp.zeros_like(x)
    gy = jnp.zeros_like(x)
    for di in range(3):
        for dj in range(3):
            win = xp[:, :, di:di + H, dj:dj + W]
            wx = _SOBEL_X[di][dj]
            wy = _SOBEL_Y[di][dj]
            if wx != 0.0:
                gx = gx + wx * win
            if wy != 0.0:
                gy = gy + wy * win
    return jnp.sqrt(gx * gx + gy * gy)


if __name__ == "__main__":
    key = jax.random.PRNGKey(0)
    cases = [
        # (shape, input dtype, forced images-per-block or None for the heuristic)
        ((2, 1, 16, 16), jnp.float32, None),    # module-like small case, W not lane-aligned
        ((4, 1, 32, 128), jnp.float32, None),   # lane-aligned W: pure roll path, no pads
        ((5, 1, 16, 128), jnp.float32, 2),      # ragged grid: 3 steps, last block partial
        ((2, 1, 16, 64), jnp.bfloat16, None),   # native bf16 HBM I/O, f32 compute/output
    ]
    for shape, dtype, blk in cases:
        key, sub = jax.random.split(key)
        x = jax.random.normal(sub, shape, dtype=jnp.float32).astype(dtype)

        out = sobel_filter(x, block_images=blk)
        jax.block_until_ready(out)

        ref = _sobel_reference(x.astype(jnp.float32))
        assert out.shape == shape
        assert out.dtype == jnp.float32
        assert jnp.allclose(out, ref, atol=2e-3, rtol=2e-3), f"mismatch at {shape} {dtype}"

    print("KERNEL_OK")
</pallas_src>

<mosaic_0001>
module attributes {stable_mosaic.version = 11 : i64} {
  func.func @_sobel_kernel(%arg0: i32, %arg1: memref<32x16xf32, #tpu.memory_space<vmem>>, %arg2: memref<32x16xf32, #tpu.memory_space<vmem>>) attributes {dimension_semantics = [#tpu.dimension_semantics<parallel>], iteration_bounds = array<i64: 1>, scalar_prefetch = 0 : i64, scratch_operands = 0 : i64, tpu.core_type = #tpu.core_type<tc>, window_params = [{transform_indices = @transform_0, window_bounds = array<i64: 32, 16>}, {transform_indices = @transform_1, window_bounds = array<i64: 32, 16>}]} {
    %c0 = arith.constant 0 : index
    %c0_0 = arith.constant 0 : index
    %0 = vector.load %arg1[%c0, %c0_0] : memref<32x16xf32, #tpu.memory_space<vmem>>, vector<32x16xf32>
    %cst = arith.constant 0.000000e+00 : f32
    %1 = vector.broadcast %cst : f32 to vector<32x112xf32>
    %2 = tpu.concatenate %0, %1 in 1 : vector<32x16xf32>, vector<32x112xf32> -> vector<32x128xf32>
    %3 = tpu.iota {dimensions = array<i32: 0>} : vector<32x128xi32>
    %c16_i32 = arith.constant 16 : i32
    %c0_i32 = arith.constant 0 : i32
    %4 = arith.cmpi eq, %c16_i32, %c0_i32 : i32
    %c1_i32 = arith.constant 1 : i32
    %5 = arith.select %4, %c1_i32, %c16_i32 : i32
    %6 = vector.broadcast %5 : i32 to vector<32x128xi32>
    %7 = arith.remsi %3, %6 : vector<32x128xi32>
    %c0_i32_1 = arith.constant 0 : i32
    %8 = vector.broadcast %c0_i32_1 : i32 to vector<32x128xi32>
    %9 = arith.cmpi ne, %7, %8 : vector<32x128xi32>
    %c0_i32_2 = arith.constant 0 : i32
    %10 = vector.broadcast %c0_i32_2 : i32 to vector<32x128xi32>
    %11 = arith.cmpi slt, %7, %10 : vector<32x128xi32>
    %c0_i32_3 = arith.constant 0 : i32
    %12 = arith.cmpi slt, %5, %c0_i32_3 : i32
    %13 = vector.broadcast %12 : i1 to vector<32x128xi1>
    %14 = vector.broadcast %13 : vector<32x128xi1> to vector<32x128xi1>
    %15 = arith.xori %11, %14 : vector<32x128xi1>
    %16 = arith.andi %15, %9 : vector<32x128xi1>
    %17 = vector.broadcast %5 : i32 to vector<32x128xi32>
    %18 = arith.addi %7, %17 : vector<32x128xi32>
    %19 = arith.select %16, %18, %7 : vector<32x128xi1>, vector<32x128xi32>
    %20 = tpu.iota {dimensions = array<i32: 1>} : vector<32x128xi32>
    %c0_i32_4 = arith.constant 0 : i32
    %21 = vector.broadcast %c0_i32_4 : i32 to vector<32x128xi32>
    %22 = arith.cmpi eq, %20, %21 : vector<32x128xi32>
    %c127_i32 = arith.constant 127 : i32
    %23 = vector.broadcast %c127_i32 : i32 to vector<32x128xi32>
    %24 = arith.cmpi eq, %20, %23 : vector<32x128xi32>
    %c0_i32_5 = arith.constant 0 : i32
    %25 = vector.broadcast %c0_i32_5 : i32 to vector<32x128xi32>
    %26 = arith.cmpi eq, %19, %25 : vector<32x128xi32>
    %c15_i32 = arith.constant 15 : i32
    %27 = vector.broadcast %c15_i32 : i32 to vector<32x128xi32>
    %28 = arith.cmpi eq, %19, %27 : vector<32x128xi32>
    %c1_i32_6 = arith.constant 1 : i32
    %29 = tpu.dynamic_rotate %2 by %c1_i32_6 dim 1 : vector<32x128xf32>, i32 -> vector<32x128xf32>
    %cst_7 = arith.constant 0.000000e+00 : f32
    %30 = vector.broadcast %cst_7 : f32 to vector<32x128xf32>
    %31 = arith.select %22, %30, %29 : vector<32x128xi1>, vector<32x128xf32>
    %c127_i32_8 = arith.constant 127 : i32
    %32 = tpu.dynamic_rotate %2 by %c127_i32_8 dim 1 : vector<32x128xf32>, i32 -> vector<32x128xf32>
    %cst_9 = arith.constant 0.000000e+00 : f32
    %33 = vector.broadcast %cst_9 : f32 to vector<32x128xf32>
    %34 = arith.select %24, %33, %32 : vector<32x128xi1>, vector<32x128xf32>
    %35 = arith.subf %34, %31 : vector<32x128xf32>
    %cst_10 = arith.constant 2.000000e+00 : f32
    %36 = vector.broadcast %cst_10 : f32 to vector<32x128xf32>
    %37 = arith.mulf %36, %2 : vector<32x128xf32>
    %38 = arith.addf %31, %37 : vector<32x128xf32>
    %39 = arith.addf %38, %34 : vector<32x128xf32>
    %c1_i32_11 = arith.constant 1 : i32
    %40 = tpu.dynamic_rotate %35 by %c1_i32_11 dim 0 : vector<32x128xf32>, i32 -> vector<32x128xf32>
    %cst_12 = arith.constant 0.000000e+00 : f32
    %41 = vector.broadcast %cst_12 : f32 to vector<32x128xf32>
    %42 = arith.select %26, %41, %40 : vector<32x128xi1>, vector<32x128xf32>
    %c31_i32 = arith.constant 31 : i32
    %43 = tpu.dynamic_rotate %35 by %c31_i32 dim 0 : vector<32x128xf32>, i32 -> vector<32x128xf32>
    %cst_13 = arith.constant 0.000000e+00 : f32
    %44 = vector.broadcast %cst_13 : f32 to vector<32x128xf32>
    %45 = arith.select %28, %44, %43 : vector<32x128xi1>, vector<32x128xf32>
    %c1_i32_14 = arith.constant 1 : i32
    %46 = tpu.dynamic_rotate %39 by %c1_i32_14 dim 0 : vector<32x128xf32>, i32 -> vector<32x128xf32>
    %cst_15 = arith.constant 0.000000e+00 : f32
    %47 = vector.broadcast %cst_15 : f32 to vector<32x128xf32>
    %48 = arith.select %26, %47, %46 : vector<32x128xi1>, vector<32x128xf32>
    %c31_i32_16 = arith.constant 31 : i32
    %49 = tpu.dynamic_rotate %39 by %c31_i32_16 dim 0 : vector<32x128xf32>, i32 -> vector<32x128xf32>
    %cst_17 = arith.constant 0.000000e+00 : f32
    %50 = vector.broadcast %cst_17 : f32 to vector<32x128xf32>
    %51 = arith.select %28, %50, %49 : vector<32x128xi1>, vector<32x128xf32>
    %cst_18 = arith.constant 2.000000e+00 : f32
    %52 = vector.broadcast %cst_18 : f32 to vector<32x128xf32>
    %53 = arith.mulf %52, %35 : vector<32x128xf32>
    %54 = arith.addf %42, %53 : vector<32x128xf32>
    %55 = arith.addf %54, %45 : vector<32x128xf32>
    %56 = arith.subf %51, %48 : vector<32x128xf32>
    %57 = arith.mulf %55, %55 : vector<32x128xf32>
    %58 = arith.mulf %56, %56 : vector<32x128xf32>
    %59 = arith.addf %57, %58 : vector<32x128xf32>
    %60 = math.sqrt %59 : vector<32x128xf32>
    %61 = vector.extract_strided_slice %60 {offsets = [0, 0], sizes = [32, 16], strides = [1, 1]} : vector<32x128xf32> to vector<32x16xf32>
    %c0_19 = arith.constant 0 : index
    %c0_20 = arith.constant 0 : index
    %62 = vector.load %arg2[%c0_19, %c0_20] : memref<32x16xf32, #tpu.memory_space<vmem>>, vector<32x16xf32>
    tpu.vector_store %arg2[%c0_19, %c0_20], %61 {strides = array<i32>} : memref<32x16xf32, #tpu.memory_space<vmem>>, vector<32x16xf32>,
    return
  }
  func.func @transform_0(%arg0: i32) -> (i32, i32) {
    %c0_i32 = arith.constant 0 : i32
    %c0_i32_0 = arith.constant 0 : i32
    return %arg0, %c0_i32 : i32, i32
  }
  func.func @transform_1(%arg0: i32) -> (i32, i32) {
    %c0_i32 = arith.constant 0 : i32
    %c0_i32_0 = arith.constant 0 : i32
    return %arg0, %c0_i32 : i32, i32
  }
}

</mosaic_0001>

<llo_original>
// kernel: tpu_custom_call.1
$region0: #{tpu_custom_call.1}
  #allocation0 [shape = 'u32[]', space=smem, size = 0x4, offset = 0x4, fixed_abs, tag = 'smem constant byte address 0x4 - core index']
  #allocation1 [shape = 'u32[72,128]{1,0:T(1,128)}', space=vmem, size = 0x9000, scoped, tag = 'internal scratch']
  %s0 = inlined_call_operand.vmem [shape: f32[32,16], index: 0, kind: input, shape index: {}]
  %s1 = inlined_call_operand.vmem [shape: f32[32,16], index: 1, kind: output, shape index: {}]
  %s2 = sld [smem:[#allocation0]]
  $region14: #{tpu_custom_call.1} parent=0
    _
  %s4 = ssub.s32 1, %s2
  %s5 = scalar_select 0, %s4, %s2
  // Predicated region
  $region2: #{tpu_custom_call.1} parent=0 // pred_check
    _
  $region3: #{tpu_custom_call.1} parent=0 // pred_check_branch
    %7 = sbr.rel (0) target = $region5
  $region4: #{tpu_custom_call.1} parent=0 // pred_region
    _
  $region5: #{tpu_custom_call.1} parent=0 // pred_fallthru
    _
  %v8 = vld [vmem:[%s0] sm:$0xff]
  %v9 = vld [vmem:[%s0 + $0x8] sm:$0xff]
  %v10 = vld [vmem:[%s0 + $0x10] sm:$0xff]
  %v11 = vld [vmem:[%s0 + $0x18] sm:$0xff]
  %vm12 = vcmask 130048
  %v13 = vsel %vm12, %v8, 0.0
  %v14 = vsel %vm12, %v9, 0.0
  %v15 = vsel %vm12, %v10, 0.0
  %v16 = vsel %vm12, %v11, 0.0
  %v17 = vlaneseq
  %v18 = vshrl.u32 %v17, 7
  %v19 = vadd.s32 %v18, 8
  %v20 = vadd.s32 %v18, 16
  %v21 = vadd.s32 %v18, 24
  %vm22 = vcmp.lt.s32.totalorder %v18, 0
  %v23 = vsub.s32 0, %v18
  %v24 = vsel %vm22, %v23, %v18
  %v25 = vshrl.u32 %v24, 4
  %v26 = vand.u32 %v24, 15
  %v27 = vsub.s32 0, %v26
  %v28 = vsel %vm22, %v27, %v26
  %vm29 = vcmp.lt.s32.totalorder %v19, 0
  %v30 = vsub.s32 0, %v19
  %v31 = vsel %vm29, %v30, %v19
  %v32 = vshrl.u32 %v31, 4
  %v33 = vand.u32 %v31, 15
  %v34 = vsub.s32 0, %v33
  %v35 = vsel %vm29, %v34, %v33
  %vm36 = vcmp.lt.s32.totalorder %v20, 0
  %v37 = vsub.s32 0, %v20
  %v38 = vsel %vm36, %v37, %v20
  %v39 = vshrl.u32 %v38, 4
  %v40 = vand.u32 %v38, 15
  %v41 = vsub.s32 0, %v40
  %v42 = vsel %vm36, %v41, %v40
  %vm43 = vcmp.lt.s32.totalorder %v21, 0
  %v44 = vsub.s32 0, %v21
  %v45 = vsel %vm43, %v44, %v21
  %v46 = vshrl.u32 %v45, 4
  %v47 = vand.u32 %v45, 15
  %v48 = vsub.s32 0, %v47
  %v49 = vsel %vm43, %v48, %v47
  %vm50 = vcmp.ne.s32.totalorder %v28, 0
  %vm51 = vcmp.ne.s32.totalorder %v35, 0
  %vm52 = vcmp.ne.s32.totalorder %v42, 0
  %vm53 = vcmp.ne.s32.totalorder %v49, 0
  %vm54 = vcmp.lt.s32.totalorder %v28, 0
  %vm55 = vcmp.lt.s32.totalorder %v35, 0
  %vm56 = vcmp.lt.s32.totalorder %v42, 0
  %vm57 = vcmp.lt.s32.totalorder %v49, 0
  %vm58 = vmand %vm54, %vm50
  %vm59 = vmand %vm55, %vm51
  %vm60 = vmand %vm56, %vm52
  %vm61 = vmand %vm57, %vm53
  %v62 = vadd.s32 %v28, 16
  %v63 = vadd.s32 %v35, 16
  %v64 = vadd.s32 %v42, 16
  %v65 = vadd.s32 %v49, 16
  %v66 = vsel %vm58, %v62, %v28
  %v67 = vsel %vm59, %v63, %v35
  %v68 = vsel %vm60, %v64, %v42
  %v69 = vsel %vm61, %v65, %v49
  %v70 = vlaneseq
  %v71 = vand.u32 %v70, 127
  %vm72 = vcmp.eq.s32.totalorder %v71, 0
  %vm73 = vcmp.eq.s32.totalorder %v71, 127
  %vm74 = vcmp.eq.s32.totalorder %v66, 0
  %vm75 = vcmp.eq.s32.totalorder %v67, 0
  %vm76 = vcmp.eq.s32.totalorder %v68, 0
  %vm77 = vcmp.eq.s32.totalorder %v69, 0
  %vm78 = vcmp.eq.s32.totalorder %v66, 15
  %vm79 = vcmp.eq.s32.totalorder %v67, 15
  %vm80 = vcmp.eq.s32.totalorder %v68, 15
  %vm81 = vcmp.eq.s32.totalorder %v69, 15
  %82 = vrot.lane.b32.xlu0 %v13, 1
  %v83 = vpop.permute.xlu0 %82
  %84 = vrot.lane.b32.xlu0 %v14, 1
  %v85 = vpop.permute.xlu0 %84
  %86 = vrot.lane.b32.xlu0 %v15, 1
  %v87 = vpop.permute.xlu0 %86
  %88 = vrot.lane.b32.xlu0 %v16, 1
  %v89 = vpop.permute.xlu0 %88
  %v90 = vsel %vm72, 0.0, %v83
  %v91 = vsel %vm72, 0.0, %v85
  %v92 = vsel %vm72, 0.0, %v87
  %v93 = vsel %vm72, 0.0, %v89
  %94 = vrot.lane.b32.xlu0 %v13, 127
  %v95 = vpop.permute.xlu0 %94
  %96 = vrot.lane.b32.xlu0 %v14, 127
  %v97 = vpop.permute.xlu0 %96
  %98 = vrot.lane.b32.xlu0 %v15, 127
  %v99 = vpop.permute.xlu0 %98
  %100 = vrot.lane.b32.xlu0 %v16, 127
  %v101 = vpop.permute.xlu0 %100
  %v102 = vsel %vm73, 0.0, %v95
  %v103 = vsel %vm73, 0.0, %v97
  %v104 = vsel %vm73, 0.0, %v99
  %v105 = vsel %vm73, 0.0, %v101
  %v106 = vsub.f32 %v102, %v90
  %v107 = vsub.f32 %v103, %v91
  %v108 = vsub.f32 %v104, %v92
  %v109 = vsub.f32 %v105, %v93
  %v110 = vmul.f32 %v13, 2.0
  %v111 = vmul.f32 %v14, 2.0
  %v112 = vmul.f32 %v15, 2.0
  %v113 = vmul.f32 %v16, 2.0
  %v114 = vadd.f32 %v90, %v110
  %v115 = vadd.f32 %v91, %v111
  %v116 = vadd.f32 %v92, %v112
  %v117 = vadd.f32 %v93, %v113
  %v118 = vadd.f32 %v114, %v102
  %v119 = vadd.f32 %v115, %v103
  %v120 = vadd.f32 %v116, %v104
  %v121 = vadd.f32 %v117, %v105
  %v122 = vrot.slane %v106, 7
  %v123 = vrot.slane %v107, 7
  %v124 = vrot.slane %v108, 7
  %v125 = vrot.slane %v109, 7
  %vm126 = vcmp.lt.s32.totalorder %v18, 1
  %v127 = vsel %vm126, %v124, %v125
  %v128 = vsel %vm126, %v123, %v124
  %v129 = vsel %vm126, %v122, %v123
  %v130 = vsel %vm126, %v125, %v122
  %v131 = vsel %vm74, 0.0, %v130
  %v132 = vsel %vm75, 0.0, %v129
  %v133 = vsel %vm76, 0.0, %v128
  %v134 = vsel %vm77, 0.0, %v127
  %v135 = vrot.slane %v106, 1
  %v136 = vrot.slane %v107, 1
  %v137 = vrot.slane %v108, 1
  %v138 = vrot.slane %v109, 1
  %vm139 = vcmp.lt.s32.totalorder %v18, 7
  %v140 = vsel %vm139, %v137, %v138
  %v141 = vsel %vm139, %v136, %v137
  %v142 = vsel %vm139, %v135, %v136
  %v143 = vsel %vm139, %v138, %v135
  %v144 = vsel %vm78, 0.0, %v142
  %v145 = vsel %vm79, 0.0, %v141
  %v146 = vsel %vm80, 0.0, %v140
  %v147 = vsel %vm81, 0.0, %v143
  %v148 = vrot.slane %v118, 7
  %v149 = vrot.slane %v119, 7
  %v150 = vrot.slane %v120, 7
  %v151 = vrot.slane %v121, 7
  %v152 = vsel %vm126, %v150, %v151
  %v153 = vsel %vm126, %v149, %v150
  %v154 = vsel %vm126, %v148, %v149
  %v155 = vsel %vm126, %v151, %v148
  %v156 = vsel %vm74, 0.0, %v155
  %v157 = vsel %vm75, 0.0, %v154
  %v158 = vsel %vm76, 0.0, %v153
  %v159 = vsel %vm77, 0.0, %v152
  %v160 = vrot.slane %v118, 1
  %v161 = vrot.slane %v119, 1
  %v162 = vrot.slane %v120, 1
  %v163 = vrot.slane %v121, 1
  %v164 = vsel %vm139, %v162, %v163
  %v165 = vsel %vm139, %v161, %v162
  %v166 = vsel %vm139, %v160, %v161
  %v167 = vsel %vm139, %v163, %v160
  %v168 = vsel %vm78, 0.0, %v166
  %v169 = vsel %vm79, 0.0, %v165
  %v170 = vsel %vm80, 0.0, %v164
  %v171 = vsel %vm81, 0.0, %v167
  %v172 = vmul.f32 %v106, 2.0
  %v173 = vmul.f32 %v107, 2.0
  %v174 = vmul.f32 %v108, 2.0
  %v175 = vmul.f32 %v109, 2.0
  %v176 = vadd.f32 %v131, %v172
  %v177 = vadd.f32 %v132, %v173
  %v178 = vadd.f32 %v133, %v174
  %v179 = vadd.f32 %v134, %v175
  %v180 = vadd.f32 %v176, %v144
  %v181 = vadd.f32 %v177, %v145
  %v182 = vadd.f32 %v178, %v146
  %v183 = vadd.f32 %v179, %v147
  %v184 = vsub.f32 %v168, %v156
  %v185 = vsub.f32 %v169, %v157
  %v186 = vsub.f32 %v170, %v158
  %v187 = vsub.f32 %v171, %v159
  %v188 = vmul.f32 %v180, %v180
  %v189 = vmul.f32 %v181, %v181
  %v190 = vmul.f32 %v182, %v182
  %v191 = vmul.f32 %v183, %v183
  %v192 = vmul.f32 %v184, %v184
  %v193 = vmul.f32 %v185, %v185
  %v194 = vmul.f32 %v186, %v186
  %v195 = vmul.f32 %v187, %v187
  %v196 = vadd.f32 %v188, %v192
  %v197 = vadd.f32 %v189, %v193
  %v198 = vadd.f32 %v190, %v194
  %v199 = vadd.f32 %v191, %v195
  %v200 = vrsqrt.pop %v196
  %v201 = vmul.f32 %v200, %v196
  %v202 = vmul.f32 %v201, %v200
  %v203 = vmul.f32 0.5, %v202
  %v204 = vsub.f32 1.5, %v203
  %v205 = vmul.f32 %v200, %v204
  %v206 = vmul.f32 %v196, %v205
  %vm207 = vcmp.eq.f32.partialorder %v196, inf
  %v208 = vsel %vm207, %v196, %v206
  %vm209 = vcmp.eq.f32.partialorder %v196, 0.0
  %v210 = vand.u32 %v196, 2147483648
  %v211 = vsel %vm209, %v210, %v208
  %v212 = vrsqrt.pop %v197
  %v213 = vmul.f32 %v212, %v197
  %v214 = vmul.f32 %v213, %v212
  %v215 = vmul.f32 0.5, %v214
  %v216 = vsub.f32 1.5, %v215
  %v217 = vmul.f32 %v212, %v216
  %v218 = vmul.f32 %v197, %v217
  %vm219 = vcmp.eq.f32.partialorder %v197, inf
  %v220 = vsel %vm219, %v197, %v218
  %vm221 = vcmp.eq.f32.partialorder %v197, 0.0
  %v222 = vand.u32 %v197, 2147483648
  %v223 = vsel %vm221, %v222, %v220
  %v224 = vrsqrt.pop %v198
  %v225 = vmul.f32 %v224, %v198
  %v226 = vmul.f32 %v225, %v224
  %v227 = vmul.f32 0.5, %v226
  %v228 = vsub.f32 1.5, %v227
  %v229 = vmul.f32 %v224, %v228
  %v230 = vmul.f32 %v198, %v229
  %vm231 = vcmp.eq.f32.partialorder %v198, inf
  %v232 = vsel %vm231, %v198, %v230
  %vm233 = vcmp.eq.f32.partialorder %v198, 0.0
  %v234 = vand.u32 %v198, 2147483648
  %v235 = vsel %vm233, %v234, %v232
  %v236 = vrsqrt.pop %v199
  %v237 = vmul.f32 %v236, %v199
  %v238 = vmul.f32 %v237, %v236
  %v239 = vmul.f32 0.5, %v238
  %v240 = vsub.f32 1.5, %v239
  %v241 = vmul.f32 %v236, %v240
  %v242 = vmul.f32 %v199, %v241
  %vm243 = vcmp.eq.f32.partialorder %v199, inf
  %v244 = vsel %vm243, %v199, %v242
  %vm245 = vcmp.eq.f32.partialorder %v199, 0.0
  %v246 = vand.u32 %v199, 2147483648
  %v247 = vsel %vm245, %v246, %v244
  %248 = vst.msk [vmem:[%s1] sm:$0xff] %vm12, %v211
  %249 = vst.msk [vmem:[%s1 + $0x8] sm:$0xff] %vm12, %v223
  %250 = vst.msk [vmem:[%s1 + $0x10] sm:$0xff] %vm12, %v235
  %251 = vst.msk [vmem:[%s1 + $0x18] sm:$0xff] %vm12, %v247
  // Predicated region
  $region6: #{tpu_custom_call.1} parent=0 // pred_check
    _
  $region7: #{tpu_custom_call.1} parent=0 // pred_check_branch
    %253 = sbr.rel (0) target = $region9
  $region8: #{tpu_custom_call.1} parent=0 // pred_region
    _
  $region9: #{tpu_custom_call.1} parent=0 // pred_fallthru
    _
  // Predicated region
  $region10: #{tpu_custom_call.1} parent=0 // pred_check
    _
  $region11: #{tpu_custom_call.1} parent=0 // pred_check_branch
    %255 = sbr.rel (0) target = $region13
  $region12: #{tpu_custom_call.1} parent=0 // pred_region
    _
  $region13: #{tpu_custom_call.1} parent=0 // pred_fallthru
    _

</llo_original>
